<compile_context>
chip_gen: v7x
topology: tpu7x:2x2x1
jax: 0.10.0
libtpu: 0.0.40
codegen_flags: <defaults>
</compile_context>

<pallas_src>
import math
import functools

import jax
import jax.numpy as jnp
from jax.experimental import pallas as pl
from jax.experimental.pallas import tpu as pltpu


# ----------------------------- kernels --------------------------------------

def _pe_add_kernel(x_ref, pe_ref, o_ref, *, batch):
    # x_ref / o_ref: (tile_s, B*D) lane-dense blocks; pe_ref: (tile_s, D).
    pe = pe_ref[...].astype(x_ref.dtype)
    if batch > 1:
        # Broadcast pe over the batch axis == tile it B times along lanes.
        pe = jnp.concatenate([pe] * batch, axis=-1)
    o_ref[...] = (x_ref[...] + pe).astype(o_ref.dtype)


def _pe_add_dropout_kernel(x_ref, pe_ref, u_ref, o_ref, *, batch, p):
    # Training path: add positional encoding, then inverted dropout using
    # pre-generated uniforms u ~ U[0,1) (streamed in with the same tiling).
    pe = pe_ref[...].astype(x_ref.dtype)
    if batch > 1:
        pe = jnp.concatenate([pe] * batch, axis=-1)
    y = (x_ref[...] + pe).astype(jnp.float32)
    keep = u_ref[...] >= jnp.float32(p)                 # P(keep) = 1 - p
    scale = jnp.float32(1.0 / (1.0 - p))
    o_ref[...] = jnp.where(keep, y * scale, jnp.float32(0.0)).astype(o_ref.dtype)


# ----------------------------- helpers ---------------------------------------

def make_positional_encoding_buffer(d_model, max_len=5000, dtype=jnp.float32):
    """Deterministic buffer setup, identical to the PyTorch __init__."""
    position = jnp.arange(0, max_len, dtype=jnp.float32)[:, None]          # (max_len, 1)
    div_term = jnp.exp(
        jnp.arange(0, d_model, 2, dtype=jnp.float32) * (-math.log(10000.0) / d_model)
    )                                                                       # (d_model/2,)
    pe = jnp.zeros((max_len, d_model), dtype=jnp.float32)
    pe = pe.at[:, 0::2].set(jnp.sin(position * div_term))
    pe = pe.at[:, 1::2].set(jnp.cos(position * div_term))
    return pe[:, None, :].astype(dtype)                                     # (max_len, 1, d_model)


def _sublane_multiple(itemsize):
    # f32 -> 8, bf16/f16 -> 16, int8/fp8 -> 32 (sublane packing).
    return {1: 32, 2: 16}.get(itemsize, 8)


def _pick_tile_s(S, row_bytes, itemsize, budget_bytes=2 << 20):
    """Rows per tile from a ~2 MiB per-x-tile VMEM budget, sublane-aligned."""
    sub = _sublane_multiple(itemsize)
    rows = max(budget_bytes // max(row_bytes, 1), sub)
    rows = (rows // sub) * sub
    if rows >= S:
        return int(S)
    return int(rows)


# ----------------------------- wrapper ---------------------------------------

def positional_encoding_forward(x, pe, *, p=0.1, training=False, key=None, tile_s=None):
    """x: (S, B, D); pe: (max_len, 1, D) or (max_len, D). Returns (S, B, D)."""
    S, B, D = x.shape
    pe2 = pe.reshape(pe.shape[0], D)        # (max_len, D); no pe[:S] slice -> no extra HBM copy
    x2 = x.reshape(S, B * D)                # lane-dense 2-D view (free, row-major)
    itemsize = x.dtype.itemsize

    if training and p >= 1.0:               # PyTorch dropout(p=1) -> all zeros
        return jnp.zeros_like(x)
    if p <= 0.0:
        training = False

    if tile_s is None:
        tile_s = _pick_tile_s(S, B * D * itemsize, itemsize)
    grid = (pl.cdiv(S, tile_s),)

    # VMEM working set: double-buffered x-in + out (+ pe + dropout uniforms).
    x_tile_b = tile_s * B * D * itemsize
    pe_tile_b = tile_s * D * pe2.dtype.itemsize
    aux_tile_b = tile_s * B * D * 4 if training else 0
    need = 2 * (2 * x_tile_b + pe_tile_b + aux_tile_b)
    vmem_limit = int(min(48 * 1024 * 1024, max(32 * 1024 * 1024, 2 * need)))

    out_shape = jax.ShapeDtypeStruct((S, B * D), x.dtype)
    x_spec = pl.BlockSpec((tile_s, B * D), lambda i: (i, 0))
    pe_spec = pl.BlockSpec((tile_s, D), lambda i: (i, 0))
    cparams = pltpu.CompilerParams(
        dimension_semantics=("parallel",),           # independent S-tiles (megacore on v7x)
        vmem_limit_bytes=vmem_limit,
    )

    if not training:
        out2 = pl.pallas_call(
            functools.partial(_pe_add_kernel, batch=B),
            out_shape=out_shape,
            grid_spec=pltpu.PrefetchScalarGridSpec(
                num_scalar_prefetch=0,
                grid=grid,
                in_specs=[x_spec, pe_spec],
                out_specs=x_spec,
            ),
            compiler_params=cparams,
        )(x2, pe2)
        return out2.reshape(S, B, D)

    # ---- training path: dropout with host-generated uniforms --------------
    if key is None:
        key = jax.random.PRNGKey(0)
    u = jax.random.uniform(key, (S, B * D), dtype=jnp.float32)
    u_spec = pl.BlockSpec((tile_s, B * D), lambda i: (i, 0))
    out2 = pl.pallas_call(
        functools.partial(_pe_add_dropout_kernel, batch=B, p=float(p)),
        out_shape=out_shape,
        grid_spec=pltpu.PrefetchScalarGridSpec(
            num_scalar_prefetch=0,
            grid=grid,
            in_specs=[x_spec, pe_spec, u_spec],
            out_specs=x_spec,
        ),
        compiler_params=cparams,
    )(x2, pe2, u)
    return out2.reshape(S, B, D)


# ----------------------------- main ------------------------------------------

if __name__ == "__main__":
    key = jax.random.PRNGKey(0)
    kx, kd = jax.random.split(key)

    S, B, D = 8, 2, 32           # seq_len, batch, d_model
    MAX_LEN = 64

    x = jax.random.normal(kx, (S, B, D), dtype=jnp.float32)
    pe = make_positional_encoding_buffer(D, max_len=MAX_LEN)

    # eval-mode forward (dropout = identity), the deterministic path
    out = positional_encoding_forward(x, pe, p=0.1, training=False)
    out = jax.block_until_ready(out)

    ref = x + pe[:S]
    assert out.shape == (S, B, D)
    assert out.dtype == x.dtype
    assert jnp.allclose(out, ref, atol=1e-6, rtol=1e-6)

    # training (dropout) path: every element is either dropped (0) or (x+pe)/(1-p)
    p = 0.1
    out_train = positional_encoding_forward(x, pe, p=p, training=True, key=kd)
    out_train = jax.block_until_ready(out_train)
    assert out_train.shape == (S, B, D)
    scaled = ref / (1.0 - p)
    ok = jnp.where(out_train == 0, True,
                   jnp.isclose(out_train, scaled, atol=1e-5, rtol=1e-5))
    assert bool(jnp.all(ok))

    print("KERNEL_OK")
</pallas_src>

<mosaic_0001>
module attributes {stable_mosaic.version = 11 : i64} {
  func.func @_pe_add_kernel(%arg0: i32, %arg1: memref<8x64xf32, #tpu.memory_space<vmem>>, %arg2: memref<8x32xf32, #tpu.memory_space<vmem>>, %arg3: memref<8x64xf32, #tpu.memory_space<vmem>>) attributes {dimension_semantics = [#tpu.dimension_semantics<parallel>], iteration_bounds = array<i64: 1>, scalar_prefetch = 0 : i64, scratch_operands = 0 : i64, tpu.core_type = #tpu.core_type<tc>, window_params = [{transform_indices = @transform_0, window_bounds = array<i64: 8, 64>}, {transform_indices = @transform_1, window_bounds = array<i64: 8, 32>}, {transform_indices = @transform_2, window_bounds = array<i64: 8, 64>}]} {
    %c0 = arith.constant 0 : index
    %c0_0 = arith.constant 0 : index
    %0 = vector.load %arg2[%c0, %c0_0] : memref<8x32xf32, #tpu.memory_space<vmem>>, vector<8x32xf32>
    %1 = tpu.concatenate %0, %0 in 1 : vector<8x32xf32>, vector<8x32xf32> -> vector<8x64xf32>
    %c0_1 = arith.constant 0 : index
    %c0_2 = arith.constant 0 : index
    %2 = vector.load %arg1[%c0_1, %c0_2] : memref<8x64xf32, #tpu.memory_space<vmem>>, vector<8x64xf32>
    %3 = arith.addf %2, %1 : vector<8x64xf32>
    %c0_3 = arith.constant 0 : index
    %c0_4 = arith.constant 0 : index
    %4 = vector.load %arg3[%c0_3, %c0_4] : memref<8x64xf32, #tpu.memory_space<vmem>>, vector<8x64xf32>
    tpu.vector_store %arg3[%c0_3, %c0_4], %3 {strides = array<i32>} : memref<8x64xf32, #tpu.memory_space<vmem>>, vector<8x64xf32>,
    return
  }
  func.func @transform_0(%arg0: i32) -> (i32, i32) {
    %c0_i32 = arith.constant 0 : i32
    %c0_i32_0 = arith.constant 0 : i32
    return %arg0, %c0_i32 : i32, i32
  }
  func.func @transform_1(%arg0: i32) -> (i32, i32) {
    %c0_i32 = arith.constant 0 : i32
    %c0_i32_0 = arith.constant 0 : i32
    return %arg0, %c0_i32 : i32, i32
  }
  func.func @transform_2(%arg0: i32) -> (i32, i32) {
    %c0_i32 = arith.constant 0 : i32
    %c0_i32_0 = arith.constant 0 : i32
    return %arg0, %c0_i32 : i32, i32
  }
}

</mosaic_0001>

<llo_original>
// kernel: tpu_custom_call.1
$region0: #{tpu_custom_call.1}
  #allocation0 [shape = 'u32[]', space=smem, size = 0x4, offset = 0x4, fixed_abs, tag = 'smem constant byte address 0x4 - core index']
  #allocation1 [shape = 'u32[144,128]{1,0:T(1,128)}', space=vmem, size = 0x12000, scoped, tag = 'internal scratch']
  %s0 = inlined_call_operand.vmem [shape: f32[8,64], index: 0, kind: input, shape index: {}]
  %s1 = inlined_call_operand.vmem [shape: f32[64,32], index: 1, kind: input, shape index: {}]
  %s2 = inlined_call_operand.hbm [shape: f32[8,64], index: 2, kind: output, shape index: {}]
  %s3 = sld [smem:[#allocation0]]
  $region18: #{tpu_custom_call.1} parent=0
    _
  %s5 = ssub.s32 1, %s3
  %s6 = scalar_select 0, %s5, %s3
  $region1: #{tpu_custom_call.1} parent=0
    #allocation2 [shape = 'u8[4096]{0}', space=vmem, size = 0x1000, scoped, tag = 'output window, operand 0, single buffered']
    #allocation3 [shape = 's32[1]{0}', space=sflag, size = 0x4, scoped, tag = 'scoped memory for tpu_custom_call.1']
    %7 = vsyncpa [#allocation3], 0
    // Predicated region
    $region2: #{tpu_custom_call.1} parent=1 // pred_check
      _
    $region3: #{tpu_custom_call.1} parent=1 // pred_check_branch
      %9 = sbr.rel (0) target = $region5
    $region4: #{tpu_custom_call.1} parent=1 // pred_region
      _
    $region5: #{tpu_custom_call.1} parent=1 // pred_fallthru
      _
    // Predicated region
    $region6: #{tpu_custom_call.1} parent=1 // pred_check
      _
    $region7: #{tpu_custom_call.1} parent=1 // pred_check_branch
      %11 = sbr.rel (0) target = $region9
    $region8: #{tpu_custom_call.1} parent=1 // pred_region
      _
    $region9: #{tpu_custom_call.1} parent=1 // pred_fallthru
      _
    %v12 = vld [vmem:[%s1] sm:$0xff]
    %14 = vrot.lane.b32.xlu0 %v12, 32
    %v15 = vpop.permute.xlu0 %14
    %vm17 = vcmask 261120
    %v18 = vsel %vm17, %v12, %v15
    %v19 = vld [vmem:[%s0] sm:$0xff]
    %v20 = vadd.f32 %v19, %v18
    %vm21 = vcmask 523264
    %22 = vst.msk [vmem:[#allocation2] sm:$0xff] %vm21, %v20
    // Predicated region
    $region10: #{tpu_custom_call.1} parent=1 // pred_check
      _
    $region11: #{tpu_custom_call.1} parent=1 // pred_check_branch
      %24 = sbr.rel (0) target = $region13
    $region12: #{tpu_custom_call.1} parent=1 // pred_region
      %s26 = ssub.s32 128, 128
      %27 = vsyncadd [#allocation3], %s26
      %s29 = sshll.u32 [#allocation2], 4
      %s30 = int_to_ptr.vmem [resolvable:$true] %s29
      %32 = dma.vmem_to_hbm [thread:$0]  %s30, 128, %s2, [#allocation3]
    $region13: #{tpu_custom_call.1} parent=1 // pred_fallthru
      _
    // Predicated region
    $region14: #{tpu_custom_call.1} parent=1 // pred_check
      _
    $region15: #{tpu_custom_call.1} parent=1 // pred_check_branch
      %34 = sbr.rel (0) target = $region17
    $region16: #{tpu_custom_call.1} parent=1 // pred_region
      %35 = dma.done [#allocation3], 128
    $region17: #{tpu_custom_call.1} parent=1 // pred_fallthru
      _
    %36 = vsyncpa [#allocation3], 1

</llo_original>
